<compile_context>
chip_gen: v7x
topology: tpu7x:2x2x1
jax: 0.10.0
libtpu: 0.0.40
codegen_flags: <defaults>
</compile_context>

<pallas_src>
import jax
import jax.numpy as jnp
from jax.experimental import pallas as pl
from jax.experimental.pallas import tpu as pltpu


def mlp_kernel(x_ref, w1_ref, b1_ref, w2_ref, b2_ref, w3_ref, b3_ref,
               w4_ref, b4_ref, o_ref):
    x = x_ref[...]                                      # (1, B)  batch on lanes

    # Layer 1: Linear(1, H) + ReLU.  K=1 matmul == outer product -> pure VPU broadcast.
    h = w1_ref[...] * x + b1_ref[...]                   # (H,1)*(1,B)+(H,1) -> (H, B)
    h = jnp.maximum(h, 0.0)

    # Layer 2: Linear(H, H) + ReLU.  MXU matmul, batch on the lane (N) dimension.
    h = jnp.dot(w2_ref[...], h,
                preferred_element_type=jnp.float32) + b2_ref[...]
    h = jnp.maximum(h, 0.0)

    # Layer 3: Linear(H, H) + ReLU.
    h = jnp.dot(w3_ref[...], h,
                preferred_element_type=jnp.float32) + b3_ref[...]
    h = jnp.maximum(h, 0.0)

    # Layer 4: Linear(H, 1).  N=1 matmul replaced by VPU mul + sublane reduce (XLU).
    out = jnp.sum(w4_ref[...] * h, axis=0, keepdims=True) + b4_ref[...]   # (1, B)
    o_ref[...] = out.astype(o_ref.dtype)


def mlp_forward(x, params, *, tile_b=None):
    """x: (N, 1) float32 -> (N, 1) float32.  Requires N % 128 == 0."""
    (w1, b1, w2, b2, w3, b3, w4, b4) = params
    N = x.shape[0]
    assert x.shape == (N, 1)
    if tile_b is None:
        # Big batch tiles amortize the ~0.35us/step overhead; cap so the (H, tile_b)
        # activations stay tiny vs VMEM (well under v7x's 64 MiB budget).
        tile_b = min(N, 2048)
    assert tile_b % 128 == 0 and N % tile_b == 0

    x_t = x.reshape(1, N)                               # batch on lanes

    full = lambda a: pl.BlockSpec(a.shape, lambda i: (0, 0))   # weights: VMEM-resident

    out_t = pl.pallas_call(
        mlp_kernel,
        out_shape=jax.ShapeDtypeStruct((1, N), jnp.float32),
        grid_spec=pl.GridSpec(
            grid=(N // tile_b,),
            in_specs=[
                pl.BlockSpec((1, tile_b), lambda i: (0, i)),   # x slab (lane-dense)
                full(w1), full(b1),
                full(w2), full(b2),
                full(w3), full(b3),
                full(w4), full(b4),
            ],
            out_specs=pl.BlockSpec((1, tile_b), lambda i: (0, i)),  # lane-dense output
        ),
        compiler_params=pltpu.CompilerParams(
            dimension_semantics=("parallel",)),
    )(x_t, w1, b1, w2, b2, w3, b3, w4, b4)

    return out_t.reshape(N, 1)


def init_params(key, hidden):
    """PyTorch-style init: U(-1/sqrt(fan_in), +1/sqrt(fan_in)); stored in the
    kernel's transposed (out, in) / column layout."""
    def u(k, shape, fan_in):
        bound = 1.0 / (fan_in ** 0.5)
        return jax.random.uniform(k, shape, jnp.float32, -bound, bound)

    k = jax.random.split(key, 8)
    w1 = u(k[0], (hidden, 1), 1)             # Linear(1, H).weight  (out, in)
    b1 = u(k[1], (hidden, 1), 1)
    w2 = u(k[2], (hidden, hidden), hidden)   # Linear(H, H).weight
    b2 = u(k[3], (hidden, 1), hidden)
    w3 = u(k[4], (hidden, hidden), hidden)
    b3 = u(k[5], (hidden, 1), hidden)
    w4 = u(k[6], (hidden, 1), hidden)        # Linear(H, 1).weight.T as a column
    b4 = u(k[7], (1, 1), hidden)
    return (w1, b1, w2, b2, w3, b3, w4, b4)


def mlp_reference(x, params):
    (w1, b1, w2, b2, w3, b3, w4, b4) = params
    h = jnp.maximum(x @ w1.T + b1.T, 0.0)    # (N, H)
    h = jnp.maximum(h @ w2.T + b2.T, 0.0)
    h = jnp.maximum(h @ w3.T + b3.T, 0.0)
    return h @ w4 + b4                       # (N, 1)


if __name__ == "__main__":
    key = jax.random.PRNGKey(0)
    kx, kp = jax.random.split(key)

    hidden = 32          # neural_num
    batch = 256          # number of (N, 1) samples (multiple of 128)

    x = jax.random.normal(kx, (batch, 1), jnp.float32)
    params = init_params(kp, hidden)

    out = mlp_forward(x, params)
    jax.block_until_ready(out)

    ref = mlp_reference(x, params)
    assert out.shape == (batch, 1)
    assert jnp.allclose(out, ref, atol=1e-5, rtol=1e-5)

    print("KERNEL_OK")
</pallas_src>

<mosaic_0001>
module attributes {stable_mosaic.version = 11 : i64} {
  func.func @mlp_kernel(%arg0: i32, %arg1: memref<1x256xf32, #tpu.memory_space<vmem>>, %arg2: memref<32x1xf32, #tpu.memory_space<vmem>>, %arg3: memref<32x1xf32, #tpu.memory_space<vmem>>, %arg4: memref<32x32xf32, #tpu.memory_space<vmem>>, %arg5: memref<32x1xf32, #tpu.memory_space<vmem>>, %arg6: memref<32x32xf32, #tpu.memory_space<vmem>>, %arg7: memref<32x1xf32, #tpu.memory_space<vmem>>, %arg8: memref<32x1xf32, #tpu.memory_space<vmem>>, %arg9: memref<1x1xf32, #tpu.memory_space<vmem>>, %arg10: memref<1x256xf32, #tpu.memory_space<vmem>>) attributes {dimension_semantics = [#tpu.dimension_semantics<parallel>], iteration_bounds = array<i64: 1>, scalar_prefetch = 0 : i64, scratch_operands = 0 : i64, tpu.core_type = #tpu.core_type<tc>, window_params = [{transform_indices = @transform_0, window_bounds = array<i64: 1, 256>}, {pipeline_mode = #tpu.pipeline_mode<synchronous>, transform_indices = @transform_1, window_bounds = array<i64: 32, 1>}, {pipeline_mode = #tpu.pipeline_mode<synchronous>, transform_indices = @transform_2, window_bounds = array<i64: 32, 1>}, {pipeline_mode = #tpu.pipeline_mode<synchronous>, transform_indices = @transform_3, window_bounds = array<i64: 32, 32>}, {pipeline_mode = #tpu.pipeline_mode<synchronous>, transform_indices = @transform_4, window_bounds = array<i64: 32, 1>}, {pipeline_mode = #tpu.pipeline_mode<synchronous>, transform_indices = @transform_5, window_bounds = array<i64: 32, 32>}, {pipeline_mode = #tpu.pipeline_mode<synchronous>, transform_indices = @transform_6, window_bounds = array<i64: 32, 1>}, {pipeline_mode = #tpu.pipeline_mode<synchronous>, transform_indices = @transform_7, window_bounds = array<i64: 32, 1>}, {pipeline_mode = #tpu.pipeline_mode<synchronous>, transform_indices = @transform_8, window_bounds = array<i64: 1, 1>}, {transform_indices = @transform_9, window_bounds = array<i64: 1, 256>}]} {
    %c0 = arith.constant 0 : index
    %c0_0 = arith.constant 0 : index
    %0 = vector.load %arg1[%c0, %c0_0] : memref<1x256xf32, #tpu.memory_space<vmem>>, vector<1x256xf32>
    %c0_1 = arith.constant 0 : index
    %c0_2 = arith.constant 0 : index
    %1 = vector.load %arg2[%c0_1, %c0_2] : memref<32x1xf32, #tpu.memory_space<vmem>>, vector<32x1xf32>
    %2 = vector.broadcast %1 : vector<32x1xf32> to vector<32x256xf32>
    %3 = vector.broadcast %0 : vector<1x256xf32> to vector<32x256xf32>
    %4 = arith.mulf %2, %3 : vector<32x256xf32>
    %c0_3 = arith.constant 0 : index
    %c0_4 = arith.constant 0 : index
    %5 = vector.load %arg3[%c0_3, %c0_4] : memref<32x1xf32, #tpu.memory_space<vmem>>, vector<32x1xf32>
    %6 = vector.broadcast %5 : vector<32x1xf32> to vector<32x256xf32>
    %7 = arith.addf %4, %6 : vector<32x256xf32>
    %cst = arith.constant 0.000000e+00 : f32
    %8 = vector.broadcast %cst : f32 to vector<32x256xf32>
    %9 = arith.maximumf %7, %8 : vector<32x256xf32>
    %c0_5 = arith.constant 0 : index
    %c0_6 = arith.constant 0 : index
    %10 = vector.load %arg4[%c0_5, %c0_6] : memref<32x32xf32, #tpu.memory_space<vmem>>, vector<32x32xf32>
    %cst_7 = arith.constant dense<0.000000e+00> : vector<32x256xf32>
    %11 = tpu.matmul %10, %9, %cst_7 {dimension_numbers = #tpu.dot_dimension_numbers<[1], [0], [0], [1], [0, 0, 1, 1], [], []>} : vector<32x32xf32>, vector<32x256xf32>, vector<32x256xf32> -> vector<32x256xf32>
    %c0_8 = arith.constant 0 : index
    %c0_9 = arith.constant 0 : index
    %12 = vector.load %arg5[%c0_8, %c0_9] : memref<32x1xf32, #tpu.memory_space<vmem>>, vector<32x1xf32>
    %13 = vector.broadcast %12 : vector<32x1xf32> to vector<32x256xf32>
    %14 = arith.addf %11, %13 : vector<32x256xf32>
    %cst_10 = arith.constant 0.000000e+00 : f32
    %15 = vector.broadcast %cst_10 : f32 to vector<32x256xf32>
    %16 = arith.maximumf %14, %15 : vector<32x256xf32>
    %c0_11 = arith.constant 0 : index
    %c0_12 = arith.constant 0 : index
    %17 = vector.load %arg6[%c0_11, %c0_12] : memref<32x32xf32, #tpu.memory_space<vmem>>, vector<32x32xf32>
    %cst_13 = arith.constant dense<0.000000e+00> : vector<32x256xf32>
    %18 = tpu.matmul %17, %16, %cst_13 {dimension_numbers = #tpu.dot_dimension_numbers<[1], [0], [0], [1], [0, 0, 1, 1], [], []>} : vector<32x32xf32>, vector<32x256xf32>, vector<32x256xf32> -> vector<32x256xf32>
    %c0_14 = arith.constant 0 : index
    %c0_15 = arith.constant 0 : index
    %19 = vector.load %arg7[%c0_14, %c0_15] : memref<32x1xf32, #tpu.memory_space<vmem>>, vector<32x1xf32>
    %20 = vector.broadcast %19 : vector<32x1xf32> to vector<32x256xf32>
    %21 = arith.addf %18, %20 : vector<32x256xf32>
    %cst_16 = arith.constant 0.000000e+00 : f32
    %22 = vector.broadcast %cst_16 : f32 to vector<32x256xf32>
    %23 = arith.maximumf %21, %22 : vector<32x256xf32>
    %c0_17 = arith.constant 0 : index
    %c0_18 = arith.constant 0 : index
    %24 = vector.load %arg8[%c0_17, %c0_18] : memref<32x1xf32, #tpu.memory_space<vmem>>, vector<32x1xf32>
    %25 = vector.broadcast %24 : vector<32x1xf32> to vector<32x256xf32>
    %26 = arith.mulf %25, %23 : vector<32x256xf32>
    %cst_19 = arith.constant dense<0.000000e+00> : vector<256xf32>
    %27 = vector.multi_reduction <add>, %26, %cst_19 [0] : vector<32x256xf32> to vector<256xf32>
    %28 = vector.shape_cast %27 : vector<256xf32> to vector<1x256xf32>
    %c0_20 = arith.constant 0 : index
    %c0_21 = arith.constant 0 : index
    %29 = vector.load %arg9[%c0_20, %c0_21] : memref<1x1xf32, #tpu.memory_space<vmem>>, vector<1x1xf32>
    %30 = vector.broadcast %29 : vector<1x1xf32> to vector<1x256xf32>
    %31 = arith.addf %28, %30 : vector<1x256xf32>
    %c0_22 = arith.constant 0 : index
    %c0_23 = arith.constant 0 : index
    %32 = vector.load %arg10[%c0_22, %c0_23] : memref<1x256xf32, #tpu.memory_space<vmem>>, vector<1x256xf32>
    tpu.vector_store %arg10[%c0_22, %c0_23], %31 {strides = array<i32>} : memref<1x256xf32, #tpu.memory_space<vmem>>, vector<1x256xf32>,
    return
  }
  func.func @transform_0(%arg0: i32) -> (i32, i32) {
    %c0_i32 = arith.constant 0 : i32
    %c0_i32_0 = arith.constant 0 : i32
    return %c0_i32, %arg0 : i32, i32
  }
  func.func @transform_1(%arg0: i32) -> (i32, i32) {
    %c0_i32 = arith.constant 0 : i32
    %c0_i32_0 = arith.constant 0 : i32
    %c0_i32_1 = arith.constant 0 : i32
    return %c0_i32, %c0_i32_0 : i32, i32
  }
  func.func @transform_2(%arg0: i32) -> (i32, i32) {
    %c0_i32 = arith.constant 0 : i32
    %c0_i32_0 = arith.constant 0 : i32
    %c0_i32_1 = arith.constant 0 : i32
    return %c0_i32, %c0_i32_0 : i32, i32
  }
  func.func @transform_3(%arg0: i32) -> (i32, i32) {
    %c0_i32 = arith.constant 0 : i32
    %c0_i32_0 = arith.constant 0 : i32
    %c0_i32_1 = arith.constant 0 : i32
    return %c0_i32, %c0_i32_0 : i32, i32
  }
  func.func @transform_4(%arg0: i32) -> (i32, i32) {
    %c0_i32 = arith.constant 0 : i32
    %c0_i32_0 = arith.constant 0 : i32
    %c0_i32_1 = arith.constant 0 : i32
    return %c0_i32, %c0_i32_0 : i32, i32
  }
  func.func @transform_5(%arg0: i32) -> (i32, i32) {
    %c0_i32 = arith.constant 0 : i32
    %c0_i32_0 = arith.constant 0 : i32
    %c0_i32_1 = arith.constant 0 : i32
    return %c0_i32, %c0_i32_0 : i32, i32
  }
  func.func @transform_6(%arg0: i32) -> (i32, i32) {
    %c0_i32 = arith.constant 0 : i32
    %c0_i32_0 = arith.constant 0 : i32
    %c0_i32_1 = arith.constant 0 : i32
    return %c0_i32, %c0_i32_0 : i32, i32
  }
  func.func @transform_7(%arg0: i32) -> (i32, i32) {
    %c0_i32 = arith.constant 0 : i32
    %c0_i32_0 = arith.constant 0 : i32
    %c0_i32_1 = arith.constant 0 : i32
    return %c0_i32, %c0_i32_0 : i32, i32
  }
  func.func @transform_8(%arg0: i32) -> (i32, i32) {
    %c0_i32 = arith.constant 0 : i32
    %c0_i32_0 = arith.constant 0 : i32
    %c0_i32_1 = arith.constant 0 : i32
    return %c0_i32, %c0_i32_0 : i32, i32
  }
  func.func @transform_9(%arg0: i32) -> (i32, i32) {
    %c0_i32 = arith.constant 0 : i32
    %c0_i32_0 = arith.constant 0 : i32
    return %c0_i32, %arg0 : i32, i32
  }
}

</mosaic_0001>

<llo_original>
// kernel: tpu_custom_call.1
$region0: #{tpu_custom_call.1}
  #allocation0 [shape = 'u32[]', space=smem, size = 0x4, offset = 0x4, fixed_abs, tag = 'smem constant byte address 0x4 - core index']
  #allocation1 [shape = 'u32[144,128]{1,0:T(1,128)}', space=vmem, size = 0x12000, scoped, tag = 'internal scratch']
  #allocation2 [shape = 'f32[1,1]{1,0:T(1,128)S(1)}', space=vmem, size = 0x200, scoped, tag = 'scoped memory for tpu_custom_call.1']
  %s0 = inlined_call_operand.vmem [shape: f32[1,256], index: 0, kind: input, shape index: {}]
  %s1 = inlined_call_operand.vmem [shape: f32[32,1], index: 1, kind: input, shape index: {}]
  %s2 = inlined_call_operand.vmem [shape: f32[32,1], index: 2, kind: input, shape index: {}]
  %s3 = inlined_call_operand.vmem [shape: f32[32,32], index: 3, kind: input, shape index: {}]
  %s4 = inlined_call_operand.vmem [shape: f32[32,1], index: 4, kind: input, shape index: {}]
  %s5 = inlined_call_operand.vmem [shape: f32[32,32], index: 5, kind: input, shape index: {}]
  %s6 = inlined_call_operand.vmem [shape: f32[32,1], index: 6, kind: input, shape index: {}]
  %s7 = inlined_call_operand.vmem [shape: f32[32,1], index: 7, kind: input, shape index: {}]
  %s8 = inlined_call_operand.<no memory space> [shape: f32[1,1], index: 8, kind: input, shape index: {}]
  %s9 = inlined_call_operand.hbm [shape: f32[1,256], index: 9, kind: output, shape index: {}]
  %s10 = sld [smem:[#allocation0]]
  $region46: #{tpu_custom_call.1} parent=0
    _
  %s12 = ssub.s32 1, %s10
  %s13 = scalar_select 0, %s12, %s10
  %v14 = vstv %s8
  %15 = vst [vmem:[#allocation2] sm:$0x1] %v14
  $region1: #{tpu_custom_call.1} parent=0
    #allocation3 [shape = 'u8[1024]{0}', space=vmem, size = 0x400, scoped, tag = 'output window, operand 0, single buffered']
    #allocation4 [shape = 's32[1]{0}', space=sflag, size = 0x4, scoped, tag = 'scoped memory for tpu_custom_call.1']
    %16 = vsyncpa [#allocation4], 0
    // Predicated region
    $region2: #{tpu_custom_call.1} parent=1 // pred_check
      _
    $region3: #{tpu_custom_call.1} parent=1 // pred_check_branch
      %18 = sbr.rel (0) target = $region5
    $region4: #{tpu_custom_call.1} parent=1 // pred_region
      _
    $region5: #{tpu_custom_call.1} parent=1 // pred_fallthru
      _
    // Predicated region
    $region6: #{tpu_custom_call.1} parent=1 // pred_check
      _
    $region7: #{tpu_custom_call.1} parent=1 // pred_check_branch
      %20 = sbr.rel (0) target = $region9
    $region8: #{tpu_custom_call.1} parent=1 // pred_region
      _
    $region9: #{tpu_custom_call.1} parent=1 // pred_fallthru
      _
    // Predicated region
    $region10: #{tpu_custom_call.1} parent=1 // pred_check
      _
    $region11: #{tpu_custom_call.1} parent=1 // pred_check_branch
      %22 = sbr.rel (0) target = $region13
    $region12: #{tpu_custom_call.1} parent=1 // pred_region
      _
    $region13: #{tpu_custom_call.1} parent=1 // pred_fallthru
      _
    // Predicated region
    $region14: #{tpu_custom_call.1} parent=1 // pred_check
      _
    $region15: #{tpu_custom_call.1} parent=1 // pred_check_branch
      %24 = sbr.rel (0) target = $region17
    $region16: #{tpu_custom_call.1} parent=1 // pred_region
      _
    $region17: #{tpu_custom_call.1} parent=1 // pred_fallthru
      _
    // Predicated region
    $region18: #{tpu_custom_call.1} parent=1 // pred_check
      _
    $region19: #{tpu_custom_call.1} parent=1 // pred_check_branch
      %26 = sbr.rel (0) target = $region21
    $region20: #{tpu_custom_call.1} parent=1 // pred_region
      _
    $region21: #{tpu_custom_call.1} parent=1 // pred_fallthru
      _
    // Predicated region
    $region22: #{tpu_custom_call.1} parent=1 // pred_check
      _
    $region23: #{tpu_custom_call.1} parent=1 // pred_check_branch
      %28 = sbr.rel (0) target = $region25
    $region24: #{tpu_custom_call.1} parent=1 // pred_region
      _
    $region25: #{tpu_custom_call.1} parent=1 // pred_fallthru
      _
    // Predicated region
    $region26: #{tpu_custom_call.1} parent=1 // pred_check
      _
    $region27: #{tpu_custom_call.1} parent=1 // pred_check_branch
      %30 = sbr.rel (0) target = $region29
    $region28: #{tpu_custom_call.1} parent=1 // pred_region
      _
    $region29: #{tpu_custom_call.1} parent=1 // pred_fallthru
      _
    // Predicated region
    $region30: #{tpu_custom_call.1} parent=1 // pred_check
      _
    $region31: #{tpu_custom_call.1} parent=1 // pred_check_branch
      %32 = sbr.rel (0) target = $region33
    $region32: #{tpu_custom_call.1} parent=1 // pred_region
      _
    $region33: #{tpu_custom_call.1} parent=1 // pred_fallthru
      _
    // Predicated region
    $region34: #{tpu_custom_call.1} parent=1 // pred_check
      _
    $region35: #{tpu_custom_call.1} parent=1 // pred_check_branch
      %34 = sbr.rel (0) target = $region37
    $region36: #{tpu_custom_call.1} parent=1 // pred_region
      _
    $region37: #{tpu_custom_call.1} parent=1 // pred_fallthru
      _
    %v35 = vld [vmem:[%s0] sm:$0x3]
    %v36 = vld [vmem:[%s1] sm:$0xff]
    %v37 = vld [vmem:[%s1 + $0x8] sm:$0xff]
    %v38 = vld [vmem:[%s1 + $0x10] sm:$0xff]
    %v39 = vld [vmem:[%s1 + $0x18] sm:$0xff]
    %41 = vset.pattern.permute.xlu0 0
    %42 = vperm.xlu0 %41, %v36
    %v43 = vpop.permute.xlu0 %42
    %46 = vset.pattern.permute.xlu0 0
    %47 = vperm.xlu0 %46, %v37
    %v48 = vpop.permute.xlu0 %47
    %51 = vset.pattern.permute.xlu0 0
    %52 = vperm.xlu0 %51, %v38
    %v53 = vpop.permute.xlu0 %52
    %56 = vset.pattern.permute.xlu0 0
    %57 = vperm.xlu0 %56, %v39
    %v58 = vpop.permute.xlu0 %57
    %v61 = vlaneseq
    %v62 = vshrl.u32 %v61, 7
    %v63 = vsub.s32 0, %v62
    %v64 = vrot.slane %v35, %v63
    %v65 = vlaneseq
    %v66 = vshrl.u32 %v65, 7
    %v67 = vsub.s32 1, %v66
    %v68 = vrot.slane %v35, %v67
    %v71 = vmul.f32 %v43, %v64
    %v72 = vmul.f32 %v43, %v68
    %v73 = vmul.f32 %v48, %v64
    %v74 = vmul.f32 %v48, %v68
    %v75 = vmul.f32 %v53, %v64
    %v76 = vmul.f32 %v53, %v68
    %v77 = vmul.f32 %v58, %v64
    %v78 = vmul.f32 %v58, %v68
    %v79 = vld [vmem:[%s2] sm:$0xff]
    %v80 = vld [vmem:[%s2 + $0x8] sm:$0xff]
    %v81 = vld [vmem:[%s2 + $0x10] sm:$0xff]
    %v82 = vld [vmem:[%s2 + $0x18] sm:$0xff]
    %84 = vset.pattern.permute.xlu0 0
    %85 = vperm.xlu0 %84, %v79
    %v86 = vpop.permute.xlu0 %85
    %89 = vset.pattern.permute.xlu0 0
    %90 = vperm.xlu0 %89, %v80
    %v91 = vpop.permute.xlu0 %90
    %94 = vset.pattern.permute.xlu0 0
    %95 = vperm.xlu0 %94, %v81
    %v96 = vpop.permute.xlu0 %95
    %99 = vset.pattern.permute.xlu0 0
    %100 = vperm.xlu0 %99, %v82
    %v101 = vpop.permute.xlu0 %100
    %v103 = vadd.f32 %v71, %v86
    %v104 = vadd.f32 %v72, %v86
    %v105 = vadd.f32 %v73, %v91
    %v106 = vadd.f32 %v74, %v91
    %v107 = vadd.f32 %v75, %v96
    %v108 = vadd.f32 %v76, %v96
    %v109 = vadd.f32 %v77, %v101
    %v110 = vadd.f32 %v78, %v101
    %v111 = vmax.f32 %v103, 0.0
    %v112 = vmax.f32 %v104, 0.0
    %v113 = vmax.f32 %v105, 0.0
    %v114 = vmax.f32 %v106, 0.0
    %v115 = vmax.f32 %v107, 0.0
    %v116 = vmax.f32 %v108, 0.0
    %v117 = vmax.f32 %v109, 0.0
    %v118 = vmax.f32 %v110, 0.0
    %v119 = vld [vmem:[%s3] sm:$0xff]
    %v120 = vld [vmem:[%s3 + $0x8] sm:$0xff]
    %v121 = vld [vmem:[%s3 + $0x10] sm:$0xff]
    %v122 = vld [vmem:[%s3 + $0x18] sm:$0xff]
    %v123 = vld [vmem:[%s4] sm:$0xff]
    %v124 = vld [vmem:[%s4 + $0x8] sm:$0xff]
    %v125 = vld [vmem:[%s4 + $0x10] sm:$0xff]
    %v126 = vld [vmem:[%s4 + $0x18] sm:$0xff]
    %128 = vset.pattern.permute.xlu0 0
    %129 = vperm.xlu0 %128, %v123
    %v130 = vpop.permute.xlu0 %129
    %133 = vset.pattern.permute.xlu0 0
    %134 = vperm.xlu0 %133, %v124
    %v135 = vpop.permute.xlu0 %134
    %138 = vset.pattern.permute.xlu0 0
    %139 = vperm.xlu0 %138, %v125
    %v140 = vpop.permute.xlu0 %139
    %143 = vset.pattern.permute.xlu0 0
    %144 = vperm.xlu0 %143, %v126
    %v145 = vpop.permute.xlu0 %144
    %vm147 = vcmask 261120
    %v149 = vsel %vm147, %v119, 0
    %v152 = vsel %vm147, %v120, 0
    %v155 = vsel %vm147, %v121, 0
    %v158 = vsel %vm147, %v122, 0
    %160 = vmatprep.subr.mxu0 %v112
    %161 = vmatpush1.msra.mxu0 %v111
    %162 = vmatprep.subr.mxu0 %v114
    %163 = vmatpush1.msra.mxu0 %v113
    %164 = vmatprep.subr.mxu0 %v116
    %165 = vmatpush1.msra.mxu0 %v115
    %166 = vmatprep.subr.mxu0 %v118
    %167 = vmatpush1.msra.mxu0 %v117
    %168 = vmatprep.subr.mxu0 0.0
    %169 = vmatpush1.msra.mxu0 0.0
    %170 = vmatprep.subr.mxu0 0.0
    %171 = vmatpush1.msra.mxu0 0.0
    %172 = vmatprep.subr.mxu0 0.0
    %173 = vmatpush1.msra.mxu0 0.0
    %174 = vmatprep.subr.mxu0 0.0
    %175 = vmatpush1.msra.mxu0 0.0
    %176 = vmatprep.subr.mxu0 0.0
    %177 = vmatpush1.msra.mxu0 0.0
    %178 = vmatprep.subr.mxu0 0.0
    %179 = vmatpush1.msra.mxu0 0.0
    %180 = vmatprep.subr.mxu0 0.0
    %181 = vmatpush1.msra.mxu0 0.0
    %182 = vmatprep.subr.mxu0 0.0
    %183 = vmatpush1.msra.mxu0 0.0
    %184 = vmatprep.subr.mxu0 0.0
    %185 = vmatpush1.msra.mxu0 0.0
    %186 = vmatprep.subr.mxu0 0.0
    %187 = vmatpush1.msra.mxu0 0.0
    %188 = vmatprep.subr.mxu0 0.0
    %189 = vmatpush1.msra.mxu0 0.0
    %190 = vmatprep.subr.mxu0 0.0
    %191 = vmatpush1.msra.mxu0 0.0
    %192 = vmatprep.subr.mxu0 0.0
    %193 = vmatpush1.msra.mxu0 0.0
    %194 = vmatprep.subr.mxu0 0.0
    %195 = vmatpush1.msra.mxu0 0.0
    %196 = vmatprep.subr.mxu0 0.0
    %197 = vmatpush1.msra.mxu0 0.0
    %198 = vmatprep.subr.mxu0 0.0
    %199 = vmatpush1.msra.mxu0 0.0
    %200 = vmatprep.subr.mxu0 0.0
    %201 = vmatpush1.msra.mxu0 0.0
    %202 = vmatprep.subr.mxu0 0.0
    %203 = vmatpush1.msra.mxu0 0.0
    %204 = vmatprep.subr.mxu0 0.0
    %205 = vmatpush1.msra.mxu0 0.0
    %206 = vmatprep.subr.mxu0 0.0
    %207 = vmatpush1.msra.mxu0 0.0
    %208 = vmatprep.subr.mxu0 0.0
    %209 = vmatpush1.msra.mxu0 0.0
    %210 = vmatprep.subr.mxu0 0.0
    %211 = vmatpush1.msra.mxu0 0.0
    %212 = vmatprep.subr.mxu0 0.0
    %213 = vmatpush1.msra.mxu0 0.0
    %214 = vmatprep.subr.mxu0 0.0
    %215 = vmatpush1.msra.mxu0 0.0
    %216 = vmatprep.subr.mxu0 0.0
    %217 = vmatpush1.msra.mxu0 0.0
    %218 = vmatprep.subr.mxu0 0.0
    %219 = vmatpush1.msra.mxu0 0.0
    %220 = vmatprep.subr.mxu0 0.0
    %221 = vmatpush1.msra.mxu0 0.0
    %222 = vmatprep.subr.mxu0 0.0
    %223 = vmatpush1.msra.mxu0 0.0
    %224 = vmatprep.mubr.f32.mxu0 0.0
    %225 = vmatmul.mubr.f32.gmra.mrb[0].mxu0 %v149
    %v226 = vpop.f32.mrb[0].mxu0
    %v227 = vadd.f32 %v130, %v226
    %v228 = vpop.f32.mrb[0].mxu0
    %v229 = vadd.f32 %v130, %v228
    %230 = vmatprep.mubr.f32.mxu0 0.0
    %231 = vmatmul.mubr.f32.gmra.mrb[0].mxu0 %v152
    %v232 = vpop.f32.mrb[0].mxu0
    %v233 = vadd.f32 %v135, %v232
    %v234 = vpop.f32.mrb[0].mxu0
    %v235 = vadd.f32 %v135, %v234
    %236 = vmatprep.mubr.f32.mxu0 0.0
    %237 = vmatmul.mubr.f32.gmra.mrb[0].mxu0 %v155
    %v238 = vpop.f32.mrb[0].mxu0
    %v239 = vadd.f32 %v140, %v238
    %v240 = vpop.f32.mrb[0].mxu0
    %v241 = vadd.f32 %v140, %v240
    %242 = vmatprep.mubr.f32.mxu0 0.0
    %243 = vmatmul.mubr.f32.gmra.mrb[0].mxu0 %v158
    %v244 = vpop.f32.mrb[0].mxu0
    %v245 = vadd.f32 %v145, %v244
    %v246 = vpop.f32.mrb[0].mxu0
    %v247 = vadd.f32 %v145, %v246
    %248 = vdwg.mxu0
    %v249 = vmax.f32 %v227, 0.0
    %v250 = vmax.f32 %v229, 0.0
    %v251 = vmax.f32 %v233, 0.0
    %v252 = vmax.f32 %v235, 0.0
    %v253 = vmax.f32 %v239, 0.0
    %v254 = vmax.f32 %v241, 0.0
    %v255 = vmax.f32 %v245, 0.0
    %v256 = vmax.f32 %v247, 0.0
    %v257 = vld [vmem:[%s5] sm:$0xff]
    %v258 = vld [vmem:[%s5 + $0x8] sm:$0xff]
    %v259 = vld [vmem:[%s5 + $0x10] sm:$0xff]
    %v260 = vld [vmem:[%s5 + $0x18] sm:$0xff]
    %v261 = vld [vmem:[%s6] sm:$0xff]
    %v262 = vld [vmem:[%s6 + $0x8] sm:$0xff]
    %v263 = vld [vmem:[%s6 + $0x10] sm:$0xff]
    %v264 = vld [vmem:[%s6 + $0x18] sm:$0xff]
    %266 = vset.pattern.permute.xlu0 0
    %267 = vperm.xlu0 %266, %v261
    %v268 = vpop.permute.xlu0 %267
    %271 = vset.pattern.permute.xlu0 0
    %272 = vperm.xlu0 %271, %v262
    %v273 = vpop.permute.xlu0 %272
    %276 = vset.pattern.permute.xlu0 0
    %277 = vperm.xlu0 %276, %v263
    %v278 = vpop.permute.xlu0 %277
    %281 = vset.pattern.permute.xlu0 0
    %282 = vperm.xlu0 %281, %v264
    %v283 = vpop.permute.xlu0 %282
    %v286 = vsel %vm147, %v257, 0
    %v289 = vsel %vm147, %v258, 0
    %v292 = vsel %vm147, %v259, 0
    %v295 = vsel %vm147, %v260, 0
    %297 = vmatprep.subr.mxu0 %v250
    %298 = vmatpush1.msra.mxu0 %v249
    %299 = vmatprep.subr.mxu0 %v252
    %300 = vmatpush1.msra.mxu0 %v251
    %301 = vmatprep.subr.mxu0 %v254
    %302 = vmatpush1.msra.mxu0 %v253
    %303 = vmatprep.subr.mxu0 %v256
    %304 = vmatpush1.msra.mxu0 %v255
    %305 = vmatprep.subr.mxu0 0.0
    %306 = vmatpush1.msra.mxu0 0.0
    %307 = vmatprep.subr.mxu0 0.0
    %308 = vmatpush1.msra.mxu0 0.0
    %309 = vmatprep.subr.mxu0 0.0
    %310 = vmatpush1.msra.mxu0 0.0
    %311 = vmatprep.subr.mxu0 0.0
    %312 = vmatpush1.msra.mxu0 0.0
    %313 = vmatprep.subr.mxu0 0.0
    %314 = vmatpush1.msra.mxu0 0.0
    %315 = vmatprep.subr.mxu0 0.0
    %316 = vmatpush1.msra.mxu0 0.0
    %317 = vmatprep.subr.mxu0 0.0
    %318 = vmatpush1.msra.mxu0 0.0
    %319 = vmatprep.subr.mxu0 0.0
    %320 = vmatpush1.msra.mxu0 0.0
    %321 = vmatprep.subr.mxu0 0.0
    %322 = vmatpush1.msra.mxu0 0.0
    %323 = vmatprep.subr.mxu0 0.0
    %324 = vmatpush1.msra.mxu0 0.0
    %325 = vmatprep.subr.mxu0 0.0
    %326 = vmatpush1.msra.mxu0 0.0
    %327 = vmatprep.subr.mxu0 0.0
    %328 = vmatpush1.msra.mxu0 0.0
    %329 = vmatprep.subr.mxu0 0.0
    %330 = vmatpush1.msra.mxu0 0.0
    %331 = vmatprep.subr.mxu0 0.0
    %332 = vmatpush1.msra.mxu0 0.0
    %333 = vmatprep.subr.mxu0 0.0
    %334 = vmatpush1.msra.mxu0 0.0
    %335 = vmatprep.subr.mxu0 0.0
    %336 = vmatpush1.msra.mxu0 0.0
    %337 = vmatprep.subr.mxu0 0.0
    %338 = vmatpush1.msra.mxu0 0.0
    %339 = vmatprep.subr.mxu0 0.0
    %340 = vmatpush1.msra.mxu0 0.0
    %341 = vmatprep.subr.mxu0 0.0
    %342 = vmatpush1.msra.mxu0 0.0
    %343 = vmatprep.subr.mxu0 0.0
    %344 = vmatpush1.msra.mxu0 0.0
    %345 = vmatprep.subr.mxu0 0.0
    %346 = vmatpush1.msra.mxu0 0.0
    %347 = vmatprep.subr.mxu0 0.0
    %348 = vmatpush1.msra.mxu0 0.0
    %349 = vmatprep.subr.mxu0 0.0
    %350 = vmatpush1.msra.mxu0 0.0
    %351 = vmatprep.subr.mxu0 0.0
    %352 = vmatpush1.msra.mxu0 0.0
    %353 = vmatprep.subr.mxu0 0.0
    %354 = vmatpush1.msra.mxu0 0.0
    %355 = vmatprep.subr.mxu0 0.0
    %356 = vmatpush1.msra.mxu0 0.0
    %357 = vmatprep.subr.mxu0 0.0
    %358 = vmatpush1.msra.mxu0 0.0
    %359 = vmatprep.subr.mxu0 0.0
    %360 = vmatpush1.msra.mxu0 0.0
    %361 = vmatprep.mubr.f32.mxu0 0.0
    %362 = vmatmul.mubr.f32.gmra.mrb[0].mxu0 %v286
    %v363 = vpop.f32.mrb[0].mxu0
    %v364 = vadd.f32 %v268, %v363
    %v365 = vpop.f32.mrb[0].mxu0
    %v366 = vadd.f32 %v268, %v365
    %367 = vmatprep.mubr.f32.mxu0 0.0
    %368 = vmatmul.mubr.f32.gmra.mrb[0].mxu0 %v289
    %v369 = vpop.f32.mrb[0].mxu0
    %v370 = vadd.f32 %v273, %v369
    %v371 = vpop.f32.mrb[0].mxu0
    %v372 = vadd.f32 %v273, %v371
    %373 = vmatprep.mubr.f32.mxu0 0.0
    %374 = vmatmul.mubr.f32.gmra.mrb[0].mxu0 %v292
    %v375 = vpop.f32.mrb[0].mxu0
    %v376 = vadd.f32 %v278, %v375
    %v377 = vpop.f32.mrb[0].mxu0
    %v378 = vadd.f32 %v278, %v377
    %379 = vmatprep.mubr.f32.mxu0 0.0
    %380 = vmatmul.mubr.f32.gmra.mrb[0].mxu0 %v295
    %v381 = vpop.f32.mrb[0].mxu0
    %v382 = vadd.f32 %v283, %v381
    %v383 = vpop.f32.mrb[0].mxu0
    %v384 = vadd.f32 %v283, %v383
    %385 = vdwg.mxu0
    %v386 = vmax.f32 %v364, 0.0
    %v387 = vmax.f32 %v366, 0.0
    %v388 = vmax.f32 %v370, 0.0
    %v389 = vmax.f32 %v372, 0.0
    %v390 = vmax.f32 %v376, 0.0
    %v391 = vmax.f32 %v378, 0.0
    %v392 = vmax.f32 %v382, 0.0
    %v393 = vmax.f32 %v384, 0.0
    %v394 = vld [vmem:[%s7] sm:$0xff]
    %v395 = vld [vmem:[%s7 + $0x8] sm:$0xff]
    %v396 = vld [vmem:[%s7 + $0x10] sm:$0xff]
    %v397 = vld [vmem:[%s7 + $0x18] sm:$0xff]
    %399 = vset.pattern.permute.xlu0 0
    %400 = vperm.xlu0 %399, %v394
    %v401 = vpop.permute.xlu0 %400
    %404 = vset.pattern.permute.xlu0 0
    %405 = vperm.xlu0 %404, %v395
    %v406 = vpop.permute.xlu0 %405
    %409 = vset.pattern.permute.xlu0 0
    %410 = vperm.xlu0 %409, %v396
    %v411 = vpop.permute.xlu0 %410
    %414 = vset.pattern.permute.xlu0 0
    %415 = vperm.xlu0 %414, %v397
    %v416 = vpop.permute.xlu0 %415
    %v418 = vmul.f32 %v401, %v386
    %v419 = vmul.f32 %v401, %v387
    %v420 = vmul.f32 %v406, %v388
    %v421 = vmul.f32 %v406, %v389
    %v422 = vmul.f32 %v411, %v390
    %v423 = vmul.f32 %v411, %v391
    %v424 = vmul.f32 %v416, %v392
    %v425 = vmul.f32 %v416, %v393
    %v426 = vadd.f32 %v418, %v420
    %v427 = vadd.f32 %v426, %v422
    %v428 = vadd.f32 %v427, %v424
    %v429 = vrot.slane %v428, 4
    %v430 = vadd.f32 %v428, %v429
    %v431 = vrot.slane %v430, 2
    %v432 = vadd.f32 %v430, %v431
    %v433 = vrot.slane %v432, 1
    %v434 = vadd.f32 %v432, %v433
    %v435 = vadd.f32 %v419, %v421
    %v436 = vadd.f32 %v435, %v423
    %v437 = vadd.f32 %v436, %v425
    %v438 = vrot.slane %v437, 4
    %v439 = vadd.f32 %v437, %v438
    %v440 = vrot.slane %v439, 2
    %v441 = vadd.f32 %v439, %v440
    %v442 = vrot.slane %v441, 1
    %v443 = vadd.f32 %v441, %v442
    %v444 = vld [vmem:[#allocation2] sm:$0x1]
    %446 = vset.pattern.permute.xlu0 0
    %447 = vperm.xlu0 %446, %v444
    %v448 = vpop.permute.xlu0 %447
    %v450 = vlaneseq
    %v451 = vshrl.u32 %v450, 7
    %v452 = vsub.s32 0, %v451
    %v453 = vrot.slane %v448, %v452
    %v454 = vadd.f32 %v434, %v453
    %v455 = vadd.f32 %v443, %v453
    %v458 = vcombine.low %v454, %v455
    %v460 = vunpack.c.l.s4 1966171168
    %v461 = vunpack.c.0.s8 %v460
    %v462 = vlaneseq
    %v463 = vshrl.u32 %v462, 7
    %v464 = vsub.s32 %v461, %v463
    %v465 = vrot.slane %v458, %v464
    %v467 = vunpack.c.l.s4 1966171168
    %v468 = vunpack.c.0.s8 %v467
    %v469 = vlaneseq
    %v470 = vshrl.u32 %v469, 7
    %v471 = vsub.s32 %v468, %v470
    %v472 = vrot.slane %v465, %v471
    %v474 = vlaneseq
    %vm475 = vcmp.ge.s32.totalorder %v474, 0
    %vm476 = vcmp.lt.s32.totalorder %v474, 256
    %vm477 = vmand %vm475, %vm476
    %478 = vst.msk [vmem:[#allocation3] sm:$0x3] %vm477, %v472
    // Predicated region
    $region38: #{tpu_custom_call.1} parent=1 // pred_check
      _
    $region39: #{tpu_custom_call.1} parent=1 // pred_check_branch
      %480 = sbr.rel (0) target = $region41
    $region40: #{tpu_custom_call.1} parent=1 // pred_region
      %s482 = ssub.s32 32, 32
      %483 = vsyncadd [#allocation4], %s482
      %s485 = sshll.u32 [#allocation3], 4
      %s486 = int_to_ptr.vmem [resolvable:$true] %s485
      %488 = dma.vmem_to_hbm [thread:$0]  %s486, 32, %s9, [#allocation4]
    $region41: #{tpu_custom_call.1} parent=1 // pred_fallthru
      _
    // Predicated region
    $region42: #{tpu_custom_call.1} parent=1 // pred_check
      _
    $region43: #{tpu_custom_call.1} parent=1 // pred_check_branch
      %490 = sbr.rel (0) target = $region45
    $region44: #{tpu_custom_call.1} parent=1 // pred_region
      %491 = dma.done [#allocation4], 32
    $region45: #{tpu_custom_call.1} parent=1 // pred_fallthru
      _
    %492 = vsyncpa [#allocation4], 1

</llo_original>
